<compile_context>
chip_gen: v6e
topology: v6e:2x2x1
jax: 0.10.0
libtpu: 0.0.40
codegen_flags: <defaults>
</compile_context>

<pallas_src>
import functools

import jax
import jax.numpy as jnp
from jax.experimental import pallas as pl
from jax.experimental.pallas import tpu as pltpu

_SMALL_PROBLEM_BYTES = 1 * 1024 * 1024  # below this, plain XLA is faster


def _diversity_partial_kernel(a_ref, b_ref, o_ref, *, criterion, n_rows,
                              tile_rows, lane_out):
    """One (TM, D) row tile -> per-row sum of the elementwise loss."""
    a = a_ref[...].astype(jnp.float32)  # (TM, D)
    b = b_ref[...].astype(jnp.float32)  # (TM, D)

    if criterion == "MSE":
        # nn.MSELoss(reduction='none'): (input - target) ** 2
        diff = a - b
        elem = diff * diff
    else:  # KLDiv
        # nn.KLDivLoss(reduction='none'): target * (log(target) - input).
        # log term contributes 0 where target <= 0 (xlogy semantics); the
        # simplified b * (safe_log_b - a) is identical and saves a select + mul.
        safe_log_b = jnp.log(jnp.where(b > 0.0, b, 1.0))
        elem = b * (safe_log_b - a)

    ragged = (n_rows % tile_rows) != 0
    base = pl.program_id(0) * tile_rows

    if lane_out:
        # Lane-dense (1, TM) output block -> unmasked wide stores.
        row_sum = jnp.sum(elem, axis=-1)[None, :]                # (1, TM)
        if ragged:
            ids = jax.lax.broadcasted_iota(jnp.int32, (1, tile_rows), 1)
            row_sum = jnp.where(base + ids < n_rows, row_sum, 0.0)
        o_ref[...] = row_sum
    else:
        # Fallback layout (always legal): (TM, 1) column of per-row sums.
        row_sum = jnp.sum(elem, axis=-1, keepdims=True)          # (TM, 1)
        if ragged:
            ids = jax.lax.broadcasted_iota(jnp.int32, (tile_rows, 1), 0)
            row_sum = jnp.where(base + ids < n_rows, row_sum, 0.0)
        o_ref[...] = row_sum


def _round_up(x, m):
    return ((x + m - 1) // m) * m


def _vmem_capacity_bytes():
    """Generation-aware VMEM capacity; conservative fallback if query fails."""
    try:
        return int(pltpu.get_tpu_info().vmem_capacity_bytes)
    except Exception:
        return 64 * 1024 * 1024  # v7x-safe fallback


def _pick_tile_rows(n_rows, d, in_itemsize, tile_budget):
    """Largest row-tile whose *total* VMEM footprint fits the budget.

    Per-row cost of one grid step:
      2 inputs x 2 pipeline buffers x D x itemsize       (auto-pipelined tiles)
      + ~5 full-tile f32 temporaries in the body          (a, b, diff/log, elem, ...)
      + 2 x 4 bytes of per-row output (negligible)
    """
    bytes_per_row = 4 * d * in_itemsize + 5 * 4 * d + 16
    tm = max(8, tile_budget // bytes_per_row)
    # Never larger than needed to cover all rows in one step.
    tm = min(tm, _round_up(n_rows, 8))
    # Prefer multiples of 128 (lane-dense output, unmasked stores); else 8.
    if tm >= 128:
        tm = (tm // 128) * 128
    else:
        tm = max(8, (tm // 8) * 8)
    return tm


def _diversity_loss_xla(a, b, target_weight, criterion, B, J, D):
    """Fused XLA fallback for tiny problems (kernel launch would dominate)."""
    a = a.astype(jnp.float32)
    b = b.astype(jnp.float32)
    if criterion == "MSE":
        elem = (a - b) ** 2
    else:
        elem = b * (jnp.log(jnp.where(b > 0.0, b, 1.0)) - a)
    per_row = jnp.sum(elem, axis=-1).reshape(B, J)
    if target_weight is not None:
        per_row = per_row * target_weight.reshape(B, J).astype(jnp.float32)
    return jnp.sum(per_row) / jnp.float32(B * J * D)


def diversity_loss(sample_a, sample_b, target_weight=None, criterion="MSE",
                   use_pallas=None):
    assert criterion in ("MSE", "KLDiv")
    B, J = sample_a.shape[0], sample_a.shape[1]
    a = sample_a.reshape(B * J, -1)
    b = sample_b.reshape(B * J, -1)
    N, D = a.shape
    itemsize = jnp.dtype(a.dtype).itemsize

    if use_pallas is None:
        use_pallas = (2 * N * D * itemsize) >= _SMALL_PROBLEM_BYTES
    if not use_pallas:
        return _diversity_loss_xla(a, b, target_weight, criterion, B, J, D)

    # Generation-aware VMEM budgeting (128 MiB on v5e/v6e, 64 MiB on v7x).
    vmem_cap = _vmem_capacity_bytes()
    vmem_limit = max(32 * 1024 * 1024,
                     min(vmem_cap - 8 * 1024 * 1024, int(0.85 * vmem_cap)))
    TM = _pick_tile_rows(N, D, itemsize, int(vmem_limit * 0.9))
    num_tiles = pl.cdiv(N, TM)

    # Lane-dense output whenever the block layout is legal for it; otherwise a
    # (TM, 1) column layout (always legal under the (8,128) block rule).
    lane_out = (TM % 128 == 0) or (num_tiles == 1)
    if lane_out:
        out_shape = jax.ShapeDtypeStruct((1, num_tiles * TM), jnp.float32)
        out_spec = pl.BlockSpec((1, TM), lambda i: (0, i))
    else:
        out_shape = jax.ShapeDtypeStruct((num_tiles * TM, 1), jnp.float32)
        out_spec = pl.BlockSpec((TM, 1), lambda i: (i, 0))

    kernel = functools.partial(
        _diversity_partial_kernel,
        criterion=criterion, n_rows=N, tile_rows=TM, lane_out=lane_out)

    # NOTE: on v7x (2 TCs) verify in xprof that the single "parallel" axis is
    # split across both cores; if not, switch to pltpu.CORE_PARALLEL. If DMA
    # bubbles remain on small tiles, consider pipeline_mode=pl.Buffered(3).
    partial = pl.pallas_call(
        kernel,
        out_shape=out_shape,
        grid_spec=pltpu.PrefetchScalarGridSpec(
            num_scalar_prefetch=0,
            grid=(num_tiles,),
            in_specs=[
                pl.BlockSpec((TM, D), lambda i: (i, 0)),  # sample_a rows
                pl.BlockSpec((TM, D), lambda i: (i, 0)),  # sample_b rows
            ],
            out_specs=out_spec,
        ),
        compiler_params=pltpu.CompilerParams(
            dimension_semantics=("parallel",),   # independent tiles -> megacore ok
            vmem_limit_bytes=int(vmem_limit),
        ),
        cost_estimate=pl.CostEstimate(
            flops=3 * N * D,
            transcendentals=(N * D if criterion == "KLDiv" else 0),
            bytes_accessed=2 * N * D * itemsize + num_tiles * TM * 4,
        ),
    )(a, b)

    # Tiny post-processing in XLA: weight, then the fused normalization
    # (mean over D) * (sum over J -> mean over B) / J  ==  sum / (B * J * D).
    per_row = partial.reshape(num_tiles * TM)[:N].reshape(B, J)
    if target_weight is not None:
        per_row = per_row * target_weight.reshape(B, J).astype(jnp.float32)
    return jnp.sum(per_row) / jnp.float32(B * J * D)


def _reference(sample_a, sample_b, target_weight=None, criterion="MSE"):
    B, J = sample_a.shape[0], sample_a.shape[1]
    a = sample_a.reshape(B, J, -1).astype(jnp.float32)
    b = sample_b.reshape(B, J, -1).astype(jnp.float32)
    if criterion == "MSE":
        elem = (a - b) ** 2
    else:
        elem = jnp.where(b > 0.0, b * jnp.log(jnp.where(b > 0.0, b, 1.0)), 0.0) - b * a
    loss = jnp.mean(elem, axis=2)
    if target_weight is not None:
        loss = loss * target_weight.reshape(B, J)
    return jnp.sum(loss, axis=1).mean() / J


if __name__ == "__main__":
    key = jax.random.PRNGKey(0)
    k1, k2, k3 = jax.random.split(key, 3)

    B, J, H, W = 2, 4, 16, 16
    sample_a = jax.random.normal(k1, (B, J, H, W), dtype=jnp.float32)
    sample_b = jax.random.normal(k2, (B, J, H, W), dtype=jnp.float32)
    target_weight = jax.random.uniform(k3, (B, J, 1), dtype=jnp.float32)

    # MSE, with weight (force the Pallas path so the kernel definitely runs).
    out = jax.block_until_ready(
        diversity_loss(sample_a, sample_b, target_weight, "MSE", use_pallas=True))
    ref = _reference(sample_a, sample_b, target_weight, "MSE")
    assert jnp.allclose(out, ref, atol=1e-5, rtol=1e-5), (out, ref)

    # MSE, no weight (default path selection).
    out2 = jax.block_until_ready(diversity_loss(sample_a, sample_b, None, "MSE"))
    ref2 = _reference(sample_a, sample_b, None, "MSE")
    assert jnp.allclose(out2, ref2, atol=1e-5, rtol=1e-5), (out2, ref2)

    # KLDiv with valid log-probs (a) / probs (b), Pallas path.
    logits_a = jax.random.normal(k1, (B, J, H * W), dtype=jnp.float32)
    logits_b = jax.random.normal(k2, (B, J, H * W), dtype=jnp.float32)
    log_p = jax.nn.log_softmax(logits_a, axis=-1).reshape(B, J, H, W)
    q = jax.nn.softmax(logits_b, axis=-1).reshape(B, J, H, W)
    out3 = jax.block_until_ready(
        diversity_loss(log_p, q, target_weight, "KLDiv", use_pallas=True))
    ref3 = _reference(log_p, q, target_weight, "KLDiv")
    assert jnp.allclose(out3, ref3, atol=1e-5, rtol=1e-5), (out3, ref3)

    # Ragged row count (N = B*J not a multiple of the tile): exercises the
    # in-kernel row-validity masking instead of the old jnp.pad path.
    B2, J2 = 3, 5
    ra = jax.random.normal(k1, (B2, J2, H, W), dtype=jnp.float32)
    rb = jax.random.normal(k2, (B2, J2, H, W), dtype=jnp.float32)
    out4 = jax.block_until_ready(diversity_loss(ra, rb, None, "MSE", use_pallas=True))
    ref4 = _reference(ra, rb, None, "MSE")
    assert jnp.allclose(out4, ref4, atol=1e-5, rtol=1e-5), (out4, ref4)

    # Tiny-input fast path (pure XLA) agrees with the reference too.
    out5 = jax.block_until_ready(
        diversity_loss(sample_a, sample_b, target_weight, "MSE", use_pallas=False))
    assert jnp.allclose(out5, ref, atol=1e-5, rtol=1e-5), (out5, ref)

    print("KERNEL_OK")
</pallas_src>

<mosaic_0001>
module attributes {stable_mosaic.version = 11 : i64} {
  func.func @_diversity_partial_kernel(%arg0: i32, %arg1: memref<8x256xf32, #tpu.memory_space<vmem>>, %arg2: memref<8x256xf32, #tpu.memory_space<vmem>>, %arg3: memref<1x8xf32, #tpu.memory_space<vmem>>) attributes {dimension_semantics = [#tpu.dimension_semantics<parallel>], iteration_bounds = array<i64: 1>, scalar_prefetch = 0 : i64, scratch_operands = 0 : i64, tpu.core_type = #tpu.core_type<tc>, window_params = [{transform_indices = @transform_0, window_bounds = array<i64: 8, 256>}, {transform_indices = @transform_1, window_bounds = array<i64: 8, 256>}, {transform_indices = @transform_2, window_bounds = array<i64: 1, 8>}]} {
    %c0 = arith.constant 0 : index
    %c0_0 = arith.constant 0 : index
    %0 = vector.load %arg1[%c0, %c0_0] : memref<8x256xf32, #tpu.memory_space<vmem>>, vector<8x256xf32>
    %c0_1 = arith.constant 0 : index
    %c0_2 = arith.constant 0 : index
    %1 = vector.load %arg2[%c0_1, %c0_2] : memref<8x256xf32, #tpu.memory_space<vmem>>, vector<8x256xf32>
    %2 = arith.subf %0, %1 : vector<8x256xf32>
    %3 = arith.mulf %2, %2 : vector<8x256xf32>
    %cst = arith.constant dense<0.000000e+00> : vector<8xf32>
    %4 = vector.multi_reduction <add>, %3, %cst [1] : vector<8x256xf32> to vector<8xf32>
    %5 = vector.shape_cast %4 : vector<8xf32> to vector<1x8xf32>
    %c0_3 = arith.constant 0 : index
    %c0_4 = arith.constant 0 : index
    %6 = vector.load %arg3[%c0_3, %c0_4] : memref<1x8xf32, #tpu.memory_space<vmem>>, vector<1x8xf32>
    tpu.vector_store %arg3[%c0_3, %c0_4], %5 {strides = array<i32>} : memref<1x8xf32, #tpu.memory_space<vmem>>, vector<1x8xf32>,
    return
  }
  func.func @transform_0(%arg0: i32) -> (i32, i32) {
    %c0_i32 = arith.constant 0 : i32
    %c0_i32_0 = arith.constant 0 : i32
    return %arg0, %c0_i32 : i32, i32
  }
  func.func @transform_1(%arg0: i32) -> (i32, i32) {
    %c0_i32 = arith.constant 0 : i32
    %c0_i32_0 = arith.constant 0 : i32
    return %arg0, %c0_i32 : i32, i32
  }
  func.func @transform_2(%arg0: i32) -> (i32, i32) {
    %c0_i32 = arith.constant 0 : i32
    %c0_i32_0 = arith.constant 0 : i32
    return %c0_i32, %arg0 : i32, i32
  }
}

</mosaic_0001>

<llo_original>
// kernel: tpu_custom_call.1
$region0: #{tpu_custom_call.1}
  #allocation0 [shape = 'u32[]', space=smem, size = 0x4, offset = 0x4, fixed_abs, tag = 'smem constant byte address 0x4 - core index']
  #allocation1 [shape = 'u32[144,128]{1,0:T(1,128)}', space=vmem, size = 0x12000, scoped, tag = 'internal scratch']
  %s0 = inlined_call_operand.hbm [shape: f32[8,256], index: 0, kind: input, shape index: {}]
  %s1 = inlined_call_operand.hbm [shape: f32[8,256], index: 1, kind: input, shape index: {}]
  %s2 = inlined_call_operand.hbm [shape: f32[1,8], index: 2, kind: output, shape index: {}]
  %s3 = sld [smem:[#allocation0]]
  $region26: #{tpu_custom_call.1} parent=0
    _
  %s5 = ssub.s32 1, %s3
  %s6 = scalar_select 0, %s5, %s3
  $region1: #{tpu_custom_call.1} parent=0
    #allocation2 [shape = 'u8[8192]{0}', space=vmem, size = 0x2000, scoped, tag = 'input window, operand 0, single buffered']
    #allocation3 [shape = 's32[1]{0}', space=sflag, size = 0x4, scoped, tag = 'scoped memory for tpu_custom_call.1']
    #allocation4 [shape = 's32[1]{0}', space=sflag, size = 0x4, scoped, tag = 'scoped memory for tpu_custom_call.1']
    #allocation5 [shape = 'u8[8192]{0}', space=vmem, size = 0x2000, scoped, tag = 'input window, operand 1, single buffered']
    #allocation6 [shape = 's32[1]{0}', space=sflag, size = 0x4, scoped, tag = 'scoped memory for tpu_custom_call.1']
    #allocation7 [shape = 'u8[512]{0}', space=vmem, size = 0x400, scoped, tag = 'output window, operand 0, single buffered']
    %7 = vsyncpa [#allocation3], 0
    %8 = vsyncpa [#allocation6], 0
    %9 = vsyncpa [#allocation4], 0
    // Predicated region
    $region2: #{tpu_custom_call.1} parent=1 // pred_check
      _
    $region3: #{tpu_custom_call.1} parent=1 // pred_check_branch
      %11 = sbr.rel (0) target = $region5
    $region4: #{tpu_custom_call.1} parent=1 // pred_region
      %s13 = ssub.s32 256, 256
      %14 = vsyncadd [#allocation3], %s13
      %s16 = sshll.u32 [#allocation2], 4
      %s17 = int_to_ptr.vmem [resolvable:$true] %s16
      %19 = dma.hbm_to_vmem [thread:$0]  %s0, 256, %s17, [#allocation3]
    $region5: #{tpu_custom_call.1} parent=1 // pred_fallthru
      _
    // Predicated region
    $region6: #{tpu_custom_call.1} parent=1 // pred_check
      _
    $region7: #{tpu_custom_call.1} parent=1 // pred_check_branch
      %21 = sbr.rel (0) target = $region9
    $region8: #{tpu_custom_call.1} parent=1 // pred_region
      %s23 = ssub.s32 256, 256
      %24 = vsyncadd [#allocation6], %s23
      %s26 = sshll.u32 [#allocation5], 4
      %s27 = int_to_ptr.vmem [resolvable:$true] %s26
      %29 = dma.hbm_to_vmem [thread:$0]  %s1, 256, %s27, [#allocation6]
    $region9: #{tpu_custom_call.1} parent=1 // pred_fallthru
      _
    // Predicated region
    $region10: #{tpu_custom_call.1} parent=1 // pred_check
      _
    $region11: #{tpu_custom_call.1} parent=1 // pred_check_branch
      %31 = sbr.rel (0) target = $region13
    $region12: #{tpu_custom_call.1} parent=1 // pred_region
      %32 = dma.done [#allocation3], 256
    $region13: #{tpu_custom_call.1} parent=1 // pred_fallthru
      _
    // Predicated region
    $region14: #{tpu_custom_call.1} parent=1 // pred_check
      _
    $region15: #{tpu_custom_call.1} parent=1 // pred_check_branch
      %34 = sbr.rel (0) target = $region17
    $region16: #{tpu_custom_call.1} parent=1 // pred_region
      %35 = dma.done [#allocation6], 256
    $region17: #{tpu_custom_call.1} parent=1 // pred_fallthru
      _
    %v36 = vld [vmem:[#allocation2] sm:$0xff]
    %v37 = vld [vmem:[#allocation2 + $0x8] sm:$0xff]
    %v38 = vld [vmem:[#allocation5] sm:$0xff]
    %v39 = vld [vmem:[#allocation5 + $0x8] sm:$0xff]
    %v40 = vsub.f32 %v36, %v38
    %v41 = vsub.f32 %v37, %v39
    %v42 = vmul.f32 %v40, %v40
    %v43 = vmul.f32 %v41, %v41
    %v44 = vadd.f32 %v42, %v43
    %45 = vadd.xlane.f32.xlu0 %v44
    %v46 = vpop.xlane.xlu0 %45
    %v48 = vlaneseq
    %v49 = vand.u32 %v48, 127
    %v50 = vlaneseq
    %v51 = vshrl.u32 %v50, 7
    %v52 = vsub.s32 %v49, %v51
    %v53 = vrot.slane %v46, %v52
    %vm55 = vcmask 57344
    %56 = vst.msk [vmem:[#allocation7] sm:$0x1] %vm55, %v53
    // Predicated region
    $region18: #{tpu_custom_call.1} parent=1 // pred_check
      _
    $region19: #{tpu_custom_call.1} parent=1 // pred_check_branch
      %58 = sbr.rel (0) target = $region21
    $region20: #{tpu_custom_call.1} parent=1 // pred_region
      %s60 = ssub.s32 16, 16
      %61 = vsyncadd [#allocation4], %s60
      %s63 = sshll.u32 [#allocation7], 4
      %s64 = int_to_ptr.vmem [resolvable:$true] %s63
      %66 = dma.vmem_to_hbm [thread:$0]  %s64, 16, %s2, [#allocation4]
    $region21: #{tpu_custom_call.1} parent=1 // pred_fallthru
      _
    // Predicated region
    $region22: #{tpu_custom_call.1} parent=1 // pred_check
      _
    $region23: #{tpu_custom_call.1} parent=1 // pred_check_branch
      %68 = sbr.rel (0) target = $region25
    $region24: #{tpu_custom_call.1} parent=1 // pred_region
      %69 = dma.done [#allocation4], 16
    $region25: #{tpu_custom_call.1} parent=1 // pred_fallthru
      _
    %70 = vsyncpa [#allocation3], 1
    %71 = vsyncpa [#allocation6], 1
    %72 = vsyncpa [#allocation4], 1

</llo_original>
